<compile_context>
chip_gen: v5e
topology: v5e:2x2
jax: 0.10.0
libtpu: 0.0.40
codegen_flags: <defaults>
</compile_context>

<pallas_src>
import functools

import numpy as np
import jax
import jax.numpy as jnp
from jax.experimental import pallas as pl
from jax.experimental.pallas import tpu as pltpu


def _round_up(a, b):
    return (a + b - 1) // b * b


def _encoder_kernel(xcT_ref, w_ref, b_ref, out_ref, *, TT, Kc, halo):
    """One (batch, time-tile) grid step.

    xcT_ref: (S, n_chunks)  transposed stride-phase view of the padded waveform
                            (bf16, per-batch resident; chunk index on the lane axis)
    w_ref  : (3C, Kpad)     fused, zero-padded conv weights (bf16, Kpad = Kc*S)
    b_ref  : (3C, 1)        fused bias (f32)
    out_ref: (3C, TT)       NCW output tile (lane axis = time -> lane-dense store)
    """
    t0 = pl.multiple_of(pl.program_id(1) * TT, TT)     # aligned lane offset of this tile
    base = xcT_ref[:, pl.ds(t0, TT + halo)]            # (S, TT+halo), one aligned load
    if Kc == 1:
        frames_t = base[:, :TT]                        # (Kpad, TT)
    else:
        # window(t)[j*S + s] == x_pad[(t0+t)*S + j*S + s] == xcT[s, t0 + t + j]
        # -> im2col built directly in (Kpad, TT) orientation: Kc lane-shifted
        #    (S, TT) blocks stacked along sublanes (no transpose, full lane width).
        frames_t = jnp.concatenate([base[:, j:j + TT] for j in range(Kc)], axis=0)
    acc = jnp.dot(w_ref[...], frames_t, preferred_element_type=jnp.float32)  # (3C, TT) f32
    out_ref[...] = (acc + b_ref[...]).astype(out_ref.dtype)


def encoder_forward(x, w_s, b_s, w_m, b_m, w_l, b_l, L1, L2, L3, *,
                    time_tile=None, out_dtype=jnp.float32):
    """x: (B, T); weights in PyTorch Conv1d layout (C, 1, K), biases (C,).

    Returns (short, middle, long, cat) in PyTorch NCW layout, matching Encoder.forward.
    """
    C = w_s.shape[0]
    assert w_s.shape[1] == 1 and w_m.shape[1] == 1 and w_l.shape[1] == 1, \
        "module unsqueezes x to (B,1,T): in_channels must be 1"
    B, T = x.shape
    S = L1 // 2
    T_s = (T - L1) // S + 1                  # output frames (== short-conv length)
    Lmax = max(L1, L2, L3)
    Kc = -(-Lmax // S)                       # S-chunks per (longest) window
    Kpad = Kc * S

    try:                                     # generation-aware knobs (v7x: 64 MiB/TC VMEM)
        vmem_cap = int(pltpu.get_tpu_info().vmem_capacity_bytes)
    except Exception:
        vmem_cap = 64 << 20

    # ---- time tile = lane axis of the output block (multiple of 128 -> unmasked
    #      stores).  Bigger tiles on 128-MiB parts amortize per-step overhead. ----
    if time_tile is not None:
        TT = int(time_tile)
        assert TT % 128 == 0, "time_tile must be a multiple of 128 (lane-dense stores)"
    elif T_s >= 1024 and vmem_cap >= (100 << 20):
        TT = 1024                            # v5e/v6e (128 MiB VMEM)
    elif T_s >= 512:
        TT = 512                             # v7x-safe default
    else:
        TT = 128
    n_t_tiles = -(-T_s // TT)
    T_s_pad = n_t_tiles * TT

    # ---- transposed stride-phase ("chunk") view of the padded waveform:
    #      x_ct[b, s, m] == x_pad[b, m*S + s].  One wrapper-side reshape+transpose
    #      over ~T samples (cast to bf16); no HBM-inflating im2col gather. ----
    halo = 0 if Kc == 1 else _round_up(Kc - 1, 128)    # per-tile lane halo
    n_chunks = T_s_pad + halo                          # covers every tile's base slice
    total = n_chunks * S
    if total >= T:
        x_pad = jnp.pad(x, ((0, 0), (0, total - T)))
    else:                                              # only if Lmax < L1; mirrors F.pad truncation
        x_pad = x[:, :total]
    x_ct = jnp.transpose(x_pad.reshape(B, n_chunks, S), (0, 2, 1)).astype(jnp.bfloat16)

    # ---- fuse the three conv weights/biases into one (3C, Kpad) block matrix so the
    #      whole encoder is a single bf16 MXU matmul + one bias add per tile ----
    # TODO(synk): if profiling shows the v5e MXU slot binding, split into a
    #             [0:2C]xroundup(L2) and [2C:3C]xKpad matmul to skip structural zeros.
    w3 = jnp.zeros((3 * C, Kpad), jnp.float32)
    w3 = w3.at[0 * C:1 * C, :L1].set(w_s[:, 0, :].astype(jnp.float32))
    w3 = w3.at[1 * C:2 * C, :L2].set(w_m[:, 0, :].astype(jnp.float32))
    w3 = w3.at[2 * C:3 * C, :L3].set(w_l[:, 0, :].astype(jnp.float32))
    w3 = w3.astype(jnp.bfloat16)
    b3 = jnp.concatenate([b_s, b_m, b_l]).astype(jnp.float32).reshape(3 * C, 1)

    # ---- per-step VMEM working set -> explicit scoped-VMEM limit (fixes v5e's
    #      16 MiB default at prod shapes; capped below device capacity for v7x) ----
    out_bytes = _round_up(3 * C, 8) * TT * np.dtype(out_dtype).itemsize
    slab_bytes = _round_up(S, 16) * _round_up(n_chunks, 128) * 2
    w_bytes = _round_up(3 * C, 16) * _round_up(Kpad, 128) * 2
    b_bytes = _round_up(3 * C, 8) * 128 * 4
    frames_bytes = 2 * _round_up(Kpad, 16) * (TT + halo) * 2
    est = 2 * slab_bytes + 2 * out_bytes + w_bytes + b_bytes + frames_bytes + (2 << 20)
    vmem_limit = int(min(max(est, 32 << 20), vmem_cap * 7 // 8))

    kernel = functools.partial(_encoder_kernel, TT=TT, Kc=Kc, halo=halo)

    def _call(single_buffer_consts):
        # Fused weights/bias have a constant index_map (VMEM-resident for the whole
        # grid); single-buffering them drops the useless second buffer.
        const_kw = {"pipeline_mode": pl.Buffered(1)} if single_buffer_consts else {}
        return pl.pallas_call(
            kernel,
            grid=(B, n_t_tiles),          # batch first: megacore split keeps slabs disjoint
            in_specs=[
                # transposed waveform chunks: re-DMA'd only when the batch changes
                pl.BlockSpec((None, S, n_chunks), lambda b, i: (b, 0, 0)),
                pl.BlockSpec((3 * C, Kpad), lambda b, i: (0, 0), **const_kw),
                pl.BlockSpec((3 * C, 1), lambda b, i: (0, 0), **const_kw),
            ],
            # Direct NCW output: lane axis = time tile (lane-dense, unmasked stores);
            # no post-kernel transpose pass is needed.
            out_specs=pl.BlockSpec((None, 3 * C, TT), lambda b, i: (b, 0, i)),
            out_shape=jax.ShapeDtypeStruct((B, 3 * C, T_s_pad), out_dtype),
            compiler_params=pltpu.CompilerParams(
                dimension_semantics=("parallel", "parallel"),
                vmem_limit_bytes=vmem_limit),
        )(x_ct, w3, b3)

    try:
        out = _call(True)
    except Exception:                      # jax version without pl.Buffered on this path
        out = _call(False)

    # Downstream users that only need `cat` should consume the padded kernel output
    # directly (out[..., :T_s]) to avoid re-materializing the per-scale copies.
    cat = out if T_s_pad == T_s else out[:, :, :T_s]
    short = cat[:, 0 * C:1 * C]
    middle = cat[:, 1 * C:2 * C]
    long_ = cat[:, 2 * C:3 * C]
    return short, middle, long_, cat


def _ref_forward_np(x, w_s, b_s, w_m, b_m, w_l, b_l, L1, L2, L3):
    """Independent float64 NumPy reference of the PyTorch forward."""
    x = np.asarray(x, np.float64)
    B, T = x.shape
    S = L1 // 2
    T_s = (T - L1) // S + 1

    def pad_to(v, L):
        if L >= v.shape[1]:
            return np.pad(v, ((0, 0), (0, L - v.shape[1])))
        return v[:, :L]

    def conv(xp, w, b, K):
        w2 = np.asarray(w, np.float64)[:, 0, :]              # (C, K)
        b2 = np.asarray(b, np.float64)
        Cn = w2.shape[0]
        out = np.zeros((B, Cn, T_s), np.float64)
        for t in range(T_s):
            seg = xp[:, t * S:t * S + K]                      # (B, K)
            out[:, :, t] = seg @ w2.T + b2
        return out

    short = conv(x, w_s, b_s, L1)
    middle = conv(pad_to(x, (T_s - 1) * S + L2), w_m, b_m, L2)
    longc = conv(pad_to(x, (T_s - 1) * S + L3), w_l, b_l, L3)
    cat = np.concatenate([short, middle, longc], axis=1)
    return short, middle, longc, cat


if __name__ == "__main__":
    # Small shapes consistent with the module: batch=2, 1-D waveform of 512 samples,
    # C=8 filters per scale, kernel sizes (L1, L2, L3) = (4, 8, 16), stride L1//2 = 2.
    # -> T_s = 255, time tile 128, grid (2 batches x 2 time tiles).
    B, T = 2, 512
    C = 8
    L1, L2, L3 = 4, 8, 16

    key = jax.random.PRNGKey(0)
    kx, k1, k2, k3, k4, k5, k6 = jax.random.split(key, 7)
    x = jax.random.normal(kx, (B, T), dtype=jnp.float32)

    # PyTorch Conv1d layouts: weight (C_out, C_in=1, K), bias (C_out,)
    w_s = jax.random.normal(k1, (C, 1, L1), jnp.float32) * 0.1
    w_m = jax.random.normal(k2, (C, 1, L2), jnp.float32) * 0.1
    w_l = jax.random.normal(k3, (C, 1, L3), jnp.float32) * 0.1
    b_s = jax.random.normal(k4, (C,), jnp.float32) * 0.1
    b_m = jax.random.normal(k5, (C,), jnp.float32) * 0.1
    b_l = jax.random.normal(k6, (C,), jnp.float32) * 0.1

    short, middle, long_, cat = encoder_forward(
        x, w_s, b_s, w_m, b_m, w_l, b_l, L1, L2, L3)
    jax.block_until_ready((short, middle, long_, cat))

    # Verify against an independent NumPy reference of the PyTorch forward.
    # (bf16 MXU operands -> slightly wider tolerance than pure f32.)
    r_short, r_middle, r_long, r_cat = _ref_forward_np(
        np.asarray(x), np.asarray(w_s), np.asarray(b_s),
        np.asarray(w_m), np.asarray(b_m), np.asarray(w_l), np.asarray(b_l),
        L1, L2, L3)
    for got, want in ((short, r_short), (middle, r_middle),
                      (long_, r_long), (cat, r_cat)):
        assert got.shape == want.shape, (got.shape, want.shape)
        np.testing.assert_allclose(np.asarray(got), want, rtol=2e-2, atol=2e-2)

    print("KERNEL_OK")
</pallas_src>

<mosaic_0001>
module attributes {stable_mosaic.version = 11 : i64} {
  func.func @_encoder_kernel(%arg0: i32, %arg1: i32, %arg2: memref<1x2x384xbf16, #tpu.memory_space<vmem>>, %arg3: memref<24x16xbf16, #tpu.memory_space<vmem>>, %arg4: memref<24x1xf32, #tpu.memory_space<vmem>>, %arg5: memref<1x24x128xf32, #tpu.memory_space<vmem>>) attributes {dimension_semantics = [#tpu.dimension_semantics<parallel>, #tpu.dimension_semantics<parallel>], iteration_bounds = array<i64: 2, 2>, scalar_prefetch = 0 : i64, scratch_operands = 0 : i64, tpu.core_type = #tpu.core_type<tc>, window_params = [{transform_indices = @transform_0, window_bounds = array<i64: 1, 2, 384>}, {pipeline_mode = #tpu.pipeline_mode<synchronous>, transform_indices = @transform_1, window_bounds = array<i64: 24, 16>}, {pipeline_mode = #tpu.pipeline_mode<synchronous>, transform_indices = @transform_2, window_bounds = array<i64: 24, 1>}, {transform_indices = @transform_3, window_bounds = array<i64: 1, 24, 128>}]} {
    %c128_i32 = arith.constant 128 : i32
    %0 = arith.muli %arg1, %c128_i32 : i32
    %1 = tpu.assume_multiple %0, 128 : i32
    %c0 = arith.constant 0 : index
    %c0_0 = arith.constant 0 : index
    %2 = arith.index_cast %1 : i32 to index
    %3 = vector.load %arg2[%c0, %c0_0, %2] : memref<1x2x384xbf16, #tpu.memory_space<vmem>>, vector<1x2x256xbf16>
    %4 = vector.shape_cast %3 : vector<1x2x256xbf16> to vector<2x256xbf16>
    %5 = vector.extract_strided_slice %4 {offsets = [0, 0], sizes = [2, 128], strides = [1, 1]} : vector<2x256xbf16> to vector<2x128xbf16>
    %6 = vector.extract_strided_slice %4 {offsets = [0, 1], sizes = [2, 128], strides = [1, 1]} : vector<2x256xbf16> to vector<2x128xbf16>
    %7 = vector.extract_strided_slice %4 {offsets = [0, 2], sizes = [2, 128], strides = [1, 1]} : vector<2x256xbf16> to vector<2x128xbf16>
    %8 = vector.extract_strided_slice %4 {offsets = [0, 3], sizes = [2, 128], strides = [1, 1]} : vector<2x256xbf16> to vector<2x128xbf16>
    %9 = vector.extract_strided_slice %4 {offsets = [0, 4], sizes = [2, 128], strides = [1, 1]} : vector<2x256xbf16> to vector<2x128xbf16>
    %10 = vector.extract_strided_slice %4 {offsets = [0, 5], sizes = [2, 128], strides = [1, 1]} : vector<2x256xbf16> to vector<2x128xbf16>
    %11 = vector.extract_strided_slice %4 {offsets = [0, 6], sizes = [2, 128], strides = [1, 1]} : vector<2x256xbf16> to vector<2x128xbf16>
    %12 = vector.extract_strided_slice %4 {offsets = [0, 7], sizes = [2, 128], strides = [1, 1]} : vector<2x256xbf16> to vector<2x128xbf16>
    %13 = tpu.concatenate %5, %6, %7, %8, %9, %10, %11, %12 in 0 : vector<2x128xbf16>, vector<2x128xbf16>, vector<2x128xbf16>, vector<2x128xbf16>, vector<2x128xbf16>, vector<2x128xbf16>, vector<2x128xbf16>, vector<2x128xbf16> -> vector<16x128xbf16>
    %c0_1 = arith.constant 0 : index
    %c0_2 = arith.constant 0 : index
    %14 = vector.load %arg3[%c0_1, %c0_2] : memref<24x16xbf16, #tpu.memory_space<vmem>>, vector<24x16xbf16>
    %cst = arith.constant dense<0.000000e+00> : vector<24x128xf32>
    %15 = tpu.matmul %14, %13, %cst {dimension_numbers = #tpu.dot_dimension_numbers<[1], [0], [0], [1], [0, 0, 1, 1], [], []>} : vector<24x16xbf16>, vector<16x128xbf16>, vector<24x128xf32> -> vector<24x128xf32>
    %c0_3 = arith.constant 0 : index
    %c0_4 = arith.constant 0 : index
    %16 = vector.load %arg4[%c0_3, %c0_4] : memref<24x1xf32, #tpu.memory_space<vmem>>, vector<24x1xf32>
    %17 = vector.broadcast %16 : vector<24x1xf32> to vector<24x128xf32>
    %18 = arith.addf %15, %17 : vector<24x128xf32>
    %c0_5 = arith.constant 0 : index
    %c0_6 = arith.constant 0 : index
    %c0_7 = arith.constant 0 : index
    %19 = vector.load %arg5[%c0_5, %c0_6, %c0_7] : memref<1x24x128xf32, #tpu.memory_space<vmem>>, vector<1x24x128xf32>
    %20 = vector.shape_cast %19 : vector<1x24x128xf32> to vector<24x128xf32>
    %21 = vector.shape_cast %18 : vector<24x128xf32> to vector<1x24x128xf32>
    tpu.vector_store %arg5[%c0_5, %c0_6, %c0_7], %21 {strides = array<i32>} : memref<1x24x128xf32, #tpu.memory_space<vmem>>, vector<1x24x128xf32>,
    return
  }
  func.func @transform_0(%arg0: i32, %arg1: i32) -> (i32, i32, i32) {
    %c0_i32 = arith.constant 0 : i32
    %c0_i32_0 = arith.constant 0 : i32
    %c0_i32_1 = arith.constant 0 : i32
    return %arg0, %c0_i32, %c0_i32_0 : i32, i32, i32
  }
  func.func @transform_1(%arg0: i32, %arg1: i32) -> (i32, i32) {
    %c0_i32 = arith.constant 0 : i32
    %c0_i32_0 = arith.constant 0 : i32
    %c0_i32_1 = arith.constant 0 : i32
    return %c0_i32, %c0_i32_0 : i32, i32
  }
  func.func @transform_2(%arg0: i32, %arg1: i32) -> (i32, i32) {
    %c0_i32 = arith.constant 0 : i32
    %c0_i32_0 = arith.constant 0 : i32
    %c0_i32_1 = arith.constant 0 : i32
    return %c0_i32, %c0_i32_0 : i32, i32
  }
  func.func @transform_3(%arg0: i32, %arg1: i32) -> (i32, i32, i32) {
    %c0_i32 = arith.constant 0 : i32
    %c0_i32_0 = arith.constant 0 : i32
    return %arg0, %c0_i32, %arg1 : i32, i32, i32
  }
}

module attributes {stable_mosaic.version = 11 : i64} {
  func.func @_encoder_kernel(%arg0: i32, %arg1: i32, %arg2: memref<1x2x384xbf16, #tpu.memory_space<vmem>>, %arg3: memref<24x16xbf16, #tpu.memory_space<vmem>>, %arg4: memref<24x1xf32, #tpu.memory_space<vmem>>, %arg5: memref<1x24x128xf32, #tpu.memory_space<vmem>>) attributes {dimension_semantics = [#tpu.dimension_semantics<parallel>, #tpu.dimension_semantics<parallel>], iteration_bounds = array<i64: 2, 2>, scalar_prefetch = 0 : i64, scratch_operands = 0 : i64, tpu.core_type = #tpu.core_type<tc>, window_params = [{transform_indices = @transform_0, window_bounds = array<i64: 1, 2, 384>}, {pipeline_mode = #tpu.pipeline_mode<synchronous>, transform_indices = @transform_1, window_bounds = array<i64: 24, 16>}, {pipeline_mode = #tpu.pipeline_mode<synchronous>, transform_indices = @transform_2, window_bounds = array<i64: 24, 1>}, {transform_indices = @transform_3, window_bounds = array<i64: 1, 24, 128>}]} {
    %c128_i32 = arith.constant 128 : i32
    %0 = arith.muli %arg1, %c128_i32 : i32
    %1 = tpu.assume_multiple %0, 128 : i32
    %c0 = arith.constant 0 : index
    %c0_0 = arith.constant 0 : index
    %2 = arith.index_cast %1 : i32 to index
    %3 = vector.load %arg2[%c0, %c0_0, %2] : memref<1x2x384xbf16, #tpu.memory_space<vmem>>, vector<1x2x256xbf16>
    %4 = vector.shape_cast %3 : vector<1x2x256xbf16> to vector<2x256xbf16>
    %5 = vector.extract_strided_slice %4 {offsets = [0, 0], sizes = [2, 128], strides = [1, 1]} : vector<2x256xbf16> to vector<2x128xbf16>
    %6 = vector.extract_strided_slice %4 {offsets = [0, 1], sizes = [2, 128], strides = [1, 1]} : vector<2x256xbf16> to vector<2x128xbf16>
    %7 = vector.extract_strided_slice %4 {offsets = [0, 2], sizes = [2, 128], strides = [1, 1]} : vector<2x256xbf16> to vector<2x128xbf16>
    %8 = vector.extract_strided_slice %4 {offsets = [0, 3], sizes = [2, 128], strides = [1, 1]} : vector<2x256xbf16> to vector<2x128xbf16>
    %9 = vector.extract_strided_slice %4 {offsets = [0, 4], sizes = [2, 128], strides = [1, 1]} : vector<2x256xbf16> to vector<2x128xbf16>
    %10 = vector.extract_strided_slice %4 {offsets = [0, 5], sizes = [2, 128], strides = [1, 1]} : vector<2x256xbf16> to vector<2x128xbf16>
    %11 = vector.extract_strided_slice %4 {offsets = [0, 6], sizes = [2, 128], strides = [1, 1]} : vector<2x256xbf16> to vector<2x128xbf16>
    %12 = vector.extract_strided_slice %4 {offsets = [0, 7], sizes = [2, 128], strides = [1, 1]} : vector<2x256xbf16> to vector<2x128xbf16>
    %13 = tpu.concatenate %5, %6, %7, %8, %9, %10, %11, %12 in 0 : vector<2x128xbf16>, vector<2x128xbf16>, vector<2x128xbf16>, vector<2x128xbf16>, vector<2x128xbf16>, vector<2x128xbf16>, vector<2x128xbf16>, vector<2x128xbf16> -> vector<16x128xbf16>
    %c0_1 = arith.constant 0 : index
    %c0_2 = arith.constant 0 : index
    %14 = vector.load %arg3[%c0_1, %c0_2] : memref<24x16xbf16, #tpu.memory_space<vmem>>, vector<24x16xbf16>
    %cst = arith.constant dense<0.000000e+00> : vector<24x128xf32>
    %15 = tpu.matmul %14, %13, %cst {dimension_numbers = #tpu.dot_dimension_numbers<[1], [0], [0], [1], [0, 0, 1, 1], [], []>} : vector<24x16xbf16>, vector<16x128xbf16>, vector<24x128xf32> -> vector<24x128xf32>
    %c0_3 = arith.constant 0 : index
    %c0_4 = arith.constant 0 : index
    %16 = vector.load %arg4[%c0_3, %c0_4] : memref<24x1xf32, #tpu.memory_space<vmem>>, vector<24x1xf32>
    %17 = vector.broadcast %16 : vector<24x1xf32> to vector<24x128xf32>
    %18 = arith.addf %15, %17 : vector<24x128xf32>
    %c0_5 = arith.constant 0 : index
    %c0_6 = arith.constant 0 : index
    %c0_7 = arith.constant 0 : index
    %19 = vector.load %arg5[%c0_5, %c0_6, %c0_7] : memref<1x24x128xf32, #tpu.memory_space<vmem>>, vector<1x24x128xf32>
    %20 = vector.shape_cast %19 : vector<1x24x128xf32> to vector<24x128xf32>
    %21 = vector.shape_cast %18 : vector<24x128xf32> to vector<1x24x128xf32>
    tpu.vector_store %arg5[%c0_5, %c0_6, %c0_7], %21 {strides = array<i32>} : memref<1x24x128xf32, #tpu.memory_space<vmem>>, vector<1x24x128xf32>,
    return
  }
  func.func @transform_0(%arg0: i32, %arg1: i32) -> (i32, i32, i32) {
    %c0_i32 = arith.constant 0 : i32
    %c0_i32_0 = arith.constant 0 : i32
    %c0_i32_1 = arith.constant 0 : i32
    return %arg0, %c0_i32, %c0_i32_0 : i32, i32, i32
  }
  func.func @transform_1(%arg0: i32, %arg1: i32) -> (i32, i32) {
    %c0_i32 = arith.constant 0 : i32
    %c0_i32_0 = arith.constant 0 : i32
    %c0_i32_1 = arith.constant 0 : i32
    return %c0_i32, %c0_i32_0 : i32, i32
  }
  func.func @transform_2(%arg0: i32, %arg1: i32) -> (i32, i32) {
    %c0_i32 = arith.constant 0 : i32
    %c0_i32_0 = arith.constant 0 : i32
    %c0_i32_1 = arith.constant 0 : i32
    return %c0_i32, %c0_i32_0 : i32, i32
  }
  func.func @transform_3(%arg0: i32, %arg1: i32) -> (i32, i32, i32) {
    %c0_i32 = arith.constant 0 : i32
    %c0_i32_0 = arith.constant 0 : i32
    return %arg0, %c0_i32, %arg1 : i32, i32, i32
  }
}

</mosaic_0001>

<llo_original>
// kernel: tpu_custom_call.1
$region0: #{tpu_custom_call.1}
  #allocation0 [shape = 'u32[]', space=smem, size = 0x4, offset = 0x4, fixed_abs, tag = 'smem constant byte address 0x4 - core index']
  #allocation1 [shape = 'u32[72,128]{1,0:T(1,128)}', space=vmem, size = 0x9000, scoped, tag = 'internal scratch']
  %s0 = inlined_call_operand.vmem [shape: bf16[2,2,384], index: 0, kind: input, shape index: {}]
  %s1 = inlined_call_operand.vmem [shape: bf16[24,16], index: 1, kind: input, shape index: {}]
  %s2 = inlined_call_operand.vmem [shape: f32[24,1], index: 2, kind: input, shape index: {}]
  %s3 = inlined_call_operand.hbm [shape: f32[2,24,256], index: 3, kind: output, shape index: {}]
  %s4 = sld [smem:[#allocation0]]
  $region45: #{tpu_custom_call.1} parent=0
    _
  %s6 = ssub.s32 1, %s4
  %s7 = scalar_select 0, %s6, %s4
  $region1: #{tpu_custom_call.1} parent=0
    #allocation2 [shape = 'u8[24576]{0}', space=vmem, size = 0x6000, scoped, tag = 'output window, operand 0']
    #allocation3 [shape = 's32[2]{0}', space=sflag, size = 0x8, scoped, tag = 'scoped memory for tpu_custom_call.1']
    %8 = vsyncpa [#allocation3], 0
    %s9 = scalar_lea.sflag [#allocation3], 1
    %10 = vsyncpa %s9, 0
    loop: start=0, step=1, limit=6
    $region2: #{tpu_custom_call.1} parent=1 // loop_pre_header
      _
    $region3: #{tpu_custom_call.1} parent=1 // loop_header
      %s12 = sphi 0, %s16
      %p13 = scmp.ge.s32.totalorder %s12, 6
      %s19 = sphi 0, %s31
      %s20 = sphi 0, %s27
      %s21 = sphi 0, %s19
      %s22 = sphi 0, %s20
      %s23 = sphi 0, %s21
      %s24 = sphi 0, %s22
      %s34 = sphi 0, %s36
      %s37 = sphi 0, %s34
      %s38 = sphi 0, %s37
      %s54 = sphi 0, %s38
      %s58 = sphi 0, %s58
      %s60 = sphi 0, %s58
      %s61 = sphi 0, %s60
      %s75 = sphi 0, %s61
      %s79 = sphi 0, %s79
      %s81 = sphi 0, %s79
      %s82 = sphi 0, %s81
      %s96 = sphi 0, %s82
      %s104 = sphi 0, %s106
      %s107 = sphi 0, %s104
      %s108 = sphi 0, %s107
      %s124 = sphi 0, %s108
    $region4: #{tpu_custom_call.1} parent=1 // loop_header_branch
      %15 = sbr.rel (%p13) target = $region8
    $region5: #{tpu_custom_call.1} parent=1 // loop_body
      %s17 = ssub.s32 %s12, 1
      %s18 = ssub.s32 %s12, 2
      %s25 = sadd.s32 1, %s20
      %p26 = scmp.ge.s32.totalorder %s25, 2
      %s27 = scalar_select %p26, 0, %s25
      %s28 = sadd.s32 1, %s19
      %s29 = scalar_select %p26, %s28, %s19
      %p30 = scmp.ge.s32.totalorder %s29, 2
      %s31 = scalar_select %p30, 0, %s29
      %s32 = ssub.s32 %s19, %s31
      %p33 = scmp.eq.s32.totalorder %s32, 0
      %s35 = sadd.s32 %s34, 1
      %s36 = scalar_select %p33, %s34, %s35
      %p39 = pneg %p33
      %p40 = scmp.eq.s32.totalorder %s12, 3
      %p41 = por %p39, %p40
      %p42 = scmp.ne.s32.totalorder %s34, %s37
      %p43 = scmp.eq.s32.totalorder %s12, 0
      %p44 = por %p42, %p43
      %p45 = scmp.ne.s32.totalorder %s34, %s37
      %p46 = scmp.eq.s32.totalorder %s17, 3
      %p47 = por %p45, %p46
      %p48 = scmp.ne.s32.totalorder %s37, %s38
      %p49 = scmp.eq.s32.totalorder %s17, 0
      %p50 = por %p48, %p49
      %p51 = scmp.ne.s32.totalorder %s37, %s38
      %p52 = scmp.eq.s32.totalorder %s18, 3
      %p53 = por %p51, %p52
      %p55 = scmp.ne.s32.totalorder %s38, %s54
      %p56 = scmp.eq.s32.totalorder %s18, 0
      %p57 = por %p55, %p56
      %s59 = sadd.s32 %s58, 1
      %p62 = scmp.eq.s32.totalorder %s12, 3
      %p63 = scmp.ne.s32.totalorder %s58, %s60
      %p64 = scmp.eq.s32.totalorder %s12, 0
      %p65 = por %p63, %p64
      %p66 = scmp.ne.s32.totalorder %s58, %s60
      %p67 = scmp.eq.s32.totalorder %s17, 3
      %p68 = por %p66, %p67
      %p69 = scmp.ne.s32.totalorder %s60, %s61
      %p70 = scmp.eq.s32.totalorder %s17, 0
      %p71 = por %p69, %p70
      %p72 = scmp.ne.s32.totalorder %s60, %s61
      %p73 = scmp.eq.s32.totalorder %s18, 3
      %p74 = por %p72, %p73
      %p76 = scmp.ne.s32.totalorder %s61, %s75
      %p77 = scmp.eq.s32.totalorder %s18, 0
      %p78 = por %p76, %p77
      %s80 = sadd.s32 %s79, 1
      %p83 = scmp.eq.s32.totalorder %s12, 3
      %p84 = scmp.ne.s32.totalorder %s79, %s81
      %p85 = scmp.eq.s32.totalorder %s12, 0
      %p86 = por %p84, %p85
      %p87 = scmp.ne.s32.totalorder %s79, %s81
      %p88 = scmp.eq.s32.totalorder %s17, 3
      %p89 = por %p87, %p88
      %p90 = scmp.ne.s32.totalorder %s81, %s82
      %p91 = scmp.eq.s32.totalorder %s17, 0
      %p92 = por %p90, %p91
      %p93 = scmp.ne.s32.totalorder %s81, %s82
      %p94 = scmp.eq.s32.totalorder %s18, 3
      %p95 = por %p93, %p94
      %p97 = scmp.ne.s32.totalorder %s82, %s96
      %p98 = scmp.eq.s32.totalorder %s18, 0
      %p99 = por %p97, %p98
      %s100 = ssub.s32 %s19, %s31
      %s101 = ssub.s32 %s20, %s27
      %s102 = sor.u32 %s100, %s101
      %p103 = scmp.eq.s32.totalorder %s102, 0
      %s105 = sadd.s32 %s104, 1
      %s106 = scalar_select %p103, %s104, %s105
      %p109 = pneg %p103
      %p110 = scmp.eq.s32.totalorder %s12, 3
      %p111 = por %p109, %p110
      %p112 = scmp.ne.s32.totalorder %s104, %s107
      %p113 = scmp.eq.s32.totalorder %s12, 0
      %p114 = por %p112, %p113
      %p115 = scmp.ne.s32.totalorder %s104, %s107
      %p116 = scmp.eq.s32.totalorder %s17, 3
      %p117 = por %p115, %p116
      %p118 = scmp.ne.s32.totalorder %s107, %s108
      %p119 = scmp.eq.s32.totalorder %s17, 0
      %p120 = por %p118, %p119
      %p121 = scmp.ne.s32.totalorder %s107, %s108
      %p122 = scmp.eq.s32.totalorder %s18, 3
      %p123 = por %p121, %p122
      %p125 = scmp.ne.s32.totalorder %s108, %s124
      %p126 = scmp.eq.s32.totalorder %s18, 0
      %p127 = por %p125, %p126
      %p128 = scmp.le.s32.totalorder 1, %s12
      %p129 = scmp.lt.s32.totalorder %s12, 5
      %p130 = pnand %p128, %p129
      %p131 = pneg %p130
      // Predicated region
      $region9: #{tpu_custom_call.1} parent=5 // pred_check
        _
      $region10: #{tpu_custom_call.1} parent=5 // pred_check_branch
        %133 = sbr.rel (%p130) target = $region12
      $region11: #{tpu_custom_call.1} parent=5 // pred_region
        %s134 = ssub.s32 %s12, 1
        // Predicated region
        $region13: #{tpu_custom_call.1} parent=11 // pred_check
          %p135 = pneg %p71
        $region14: #{tpu_custom_call.1} parent=11 // pred_check_branch
          %137 = sbr.rel (%p135) target = $region16
        $region15: #{tpu_custom_call.1} parent=11 // pred_region
          _
        $region16: #{tpu_custom_call.1} parent=11 // pred_fallthru
          _
        // Predicated region
        $region17: #{tpu_custom_call.1} parent=11 // pred_check
          %p138 = pneg %p92
        $region18: #{tpu_custom_call.1} parent=11 // pred_check_branch
          %140 = sbr.rel (%p138) target = $region20
        $region19: #{tpu_custom_call.1} parent=11 // pred_region
          _
        $region20: #{tpu_custom_call.1} parent=11 // pred_fallthru
          _
      $region12: #{tpu_custom_call.1} parent=5 // pred_fallthru
        _
      %p141 = scmp.lt.s32.totalorder %s12, 4
      // Predicated region
      $region21: #{tpu_custom_call.1} parent=5 // pred_check
        %p142 = pneg %p141
      $region22: #{tpu_custom_call.1} parent=5 // pred_check_branch
        %144 = sbr.rel (%p142) target = $region24
      $region23: #{tpu_custom_call.1} parent=5 // pred_region
        // Predicated region
        $region25: #{tpu_custom_call.1} parent=23 // pred_check
          %p145 = pneg %p44
        $region26: #{tpu_custom_call.1} parent=23 // pred_check_branch
          %147 = sbr.rel (%p145) target = $region28
        $region27: #{tpu_custom_call.1} parent=23 // pred_region
          %p148 = scmp.lt.s32.totalorder %s19, 1
          %s149 = scalar_select %p148, %s19, 1
          %s150 = smul.addr %s149, 3
          %s151 = scalar_lea.vmem %s0, %s150
        $region28: #{tpu_custom_call.1} parent=23 // pred_fallthru
          _
      $region24: #{tpu_custom_call.1} parent=5 // pred_fallthru
        _
      %p152 = scmp.le.s32.totalorder 1, %s12
      %p153 = scmp.lt.s32.totalorder %s12, 5
      %p154 = pnand %p152, %p153
      %p155 = pneg %p154
      // Predicated region
      $region29: #{tpu_custom_call.1} parent=5 // pred_check
        _
      $region30: #{tpu_custom_call.1} parent=5 // pred_check_branch
        %157 = sbr.rel (%p154) target = $region32
      $region31: #{tpu_custom_call.1} parent=5 // pred_region
        %s158 = ssub.s32 %s12, 1
        %p159 = scmp.lt.s32.totalorder %s21, 1
        %s160 = scalar_select %p159, %s21, 1
        %s161 = smul.addr %s160, 3
        %s162 = scalar_lea.vmem %s0, %s161
        %p163 = pneg %p50
        %p164 = pneg %p47
        %p165 = pneg %p71
        %p166 = pneg %p68
        %p167 = pneg %p92
        %p168 = pneg %p89
        %p169 = pneg %p120
        %p170 = pneg %p117
        %s171 = sand.u32 %s107, 1
        %s172 = scalar_lea.sflag [#allocation3], %s171
        %s173 = sand.u32 %s107, 1
        %s174 = smul.addr %s173, 24
        %s175 = scalar_lea.vmem [#allocation2], %s174
        %p176 = scmp.lt.s32.totalorder %s21, 1
        %s177 = scalar_select %p176, %s21, 1
        %s178 = smul.addr %s177, 3
        %s179 = scalar_lea.vmem %s0, %s178
        %s181 = smul.u32 %s22, 128
        %s182 = sshra.s32 %s181, 7
        %s183 = sand.u32 %s181, 127
        %s184 = scalar_lea.vmem %s179, %s182
        %v185 = vld [vmem:[%s184] sm:$0x3]
        %s187 = scalar_lea.vmem [#allocation1], 1
        %188 = vst [vmem:[%s187] ss:$9 sm:$0xff] %v185
        %v189 = vld [vmem:[#allocation1] sm:$0xff]
        %v191 = vld [vmem:[#allocation1 + $0x9] sm:$0xff]
        %193 = vrot.lane.b32.xlu0 %v189, 127
        %v194 = vpop.permute.xlu0 %193
        %195 = vrot.lane.b32.xlu0 %v191, 127
        %v196 = vpop.permute.xlu0 %195
        %vm197 = vcmask 1039360
        %v198 = vsel %vm197, %v194, %v196
        %s199 = scalar_lea.vmem [#allocation1], 2
        %200 = vst [vmem:[%s199] ss:$9 sm:$0xff] %v185
        %v201 = vld [vmem:[#allocation1] sm:$0xff]
        %v203 = vld [vmem:[#allocation1 + $0x9] sm:$0xff]
        %205 = vrot.lane.b32.xlu0 %v201, 126
        %v206 = vpop.permute.xlu0 %205
        %207 = vrot.lane.b32.xlu0 %v203, 126
        %v208 = vpop.permute.xlu0 %207
        %vm209 = vcmask 1031168
        %v210 = vsel %vm209, %v206, %v208
        %s211 = scalar_lea.vmem [#allocation1], 3
        %212 = vst [vmem:[%s211] ss:$9 sm:$0xff] %v185
        %v213 = vld [vmem:[#allocation1] sm:$0xff]
        %v215 = vld [vmem:[#allocation1 + $0x9] sm:$0xff]
        %217 = vrot.lane.b32.xlu0 %v213, 125
        %v218 = vpop.permute.xlu0 %217
        %219 = vrot.lane.b32.xlu0 %v215, 125
        %v220 = vpop.permute.xlu0 %219
        %vm221 = vcmask 1022976
        %v222 = vsel %vm221, %v218, %v220
        %s223 = scalar_lea.vmem [#allocation1], 4
        %224 = vst [vmem:[%s223] ss:$9 sm:$0xff] %v185
        %v225 = vld [vmem:[#allocation1] sm:$0xff]
        %v227 = vld [vmem:[#allocation1 + $0x9] sm:$0xff]
        %229 = vrot.lane.b32.xlu0 %v225, 124
        %v230 = vpop.permute.xlu0 %229
        %231 = vrot.lane.b32.xlu0 %v227, 124
        %v232 = vpop.permute.xlu0 %231
        %vm233 = vcmask 1014784
        %v234 = vsel %vm233, %v230, %v232
        %s235 = scalar_lea.vmem [#allocation1], 5
        %236 = vst [vmem:[%s235] ss:$9 sm:$0xff] %v185
        %v237 = vld [vmem:[#allocation1] sm:$0xff]
        %v239 = vld [vmem:[#allocation1 + $0x9] sm:$0xff]
        %241 = vrot.lane.b32.xlu0 %v237, 123
        %v242 = vpop.permute.xlu0 %241
        %243 = vrot.lane.b32.xlu0 %v239, 123
        %v244 = vpop.permute.xlu0 %243
        %vm245 = vcmask 1006592
        %v246 = vsel %vm245, %v242, %v244
        %s247 = scalar_lea.vmem [#allocation1], 6
        %248 = vst [vmem:[%s247] ss:$9 sm:$0xff] %v185
        %v249 = vld [vmem:[#allocation1] sm:$0xff]
        %v251 = vld [vmem:[#allocation1 + $0x9] sm:$0xff]
        %253 = vrot.lane.b32.xlu0 %v249, 122
        %v254 = vpop.permute.xlu0 %253
        %255 = vrot.lane.b32.xlu0 %v251, 122
        %v256 = vpop.permute.xlu0 %255
        %vm257 = vcmask 998400
        %v258 = vsel %vm257, %v254, %v256
        %s259 = scalar_lea.vmem [#allocation1], 7
        %260 = vst [vmem:[%s259] ss:$9 sm:$0xff] %v185
        %v261 = vld [vmem:[#allocation1] sm:$0xff]
        %v263 = vld [vmem:[#allocation1 + $0x9] sm:$0xff]
        %265 = vrot.lane.b32.xlu0 %v261, 121
        %v266 = vpop.permute.xlu0 %265
        %267 = vrot.lane.b32.xlu0 %v263, 121
        %v268 = vpop.permute.xlu0 %267
        %vm269 = vcmask 990208
        %v270 = vsel %vm269, %v266, %v268
        %vm271 = vcmask 1040384
        %v273 = vsel %vm271, %v185, %v198
        %vm274 = vcmask 1041408
        %v276 = vsel %vm274, %v273, %v210
        %vm277 = vcmask 1042432
        %v279 = vsel %vm277, %v276, %v222
        %vm280 = vcmask 1043456
        %v282 = vsel %vm280, %v279, %v234
        %vm283 = vcmask 1044480
        %v285 = vsel %vm283, %v282, %v246
        %vm286 = vcmask 1045504
        %v288 = vsel %vm286, %v285, %v258
        %vm289 = vcmask 1046528
        %v291 = vsel %vm289, %v288, %v270
        %v293 = vld [vmem:[%s1] sm:$0xf]
        %v294 = vld [vmem:[%s1 + $0x4] sm:$0xf]
        %v295 = vld [vmem:[%s1 + $0x8] sm:$0xf]
        %v296 = vld [vmem:[%s2] sm:$0xff]
        %v297 = vld [vmem:[%s2 + $0x8] sm:$0xff]
        %v298 = vld [vmem:[%s2 + $0x10] sm:$0xff]
        %300 = vset.pattern.permute.xlu0 0
        %301 = vperm.xlu0 %300, %v296
        %v302 = vpop.permute.xlu0 %301
        %305 = vset.pattern.permute.xlu0 0
        %306 = vperm.xlu0 %305, %v297
        %v307 = vpop.permute.xlu0 %306
        %310 = vset.pattern.permute.xlu0 0
        %311 = vperm.xlu0 %310, %v298
        %v312 = vpop.permute.xlu0 %311
        %v317 = vunpack.c.l.b16 %v293
        %v318 = vunpack.c.l.b16 %v294
        %v319 = vunpack.c.l.b16 %v295
        %v320 = vpack.c.b16 %v318, %v317
        %v321 = vpack.c.b16 %v319, %v319
        %vm322 = vcmask 130048
        %v324 = vsel %vm322, %v320, 0
        %v327 = vsel %vm322, %v321, 0
        %329 = vmatpush.bf16.msra.mxu0 0
        %330 = vmatpush.bf16.msra.mxu0 0
        %331 = vmatpush.bf16.msra.mxu0 0
        %332 = vmatpush.bf16.msra.mxu0 0
        %333 = vmatpush.bf16.msra.mxu0 0
        %334 = vmatpush.bf16.msra.mxu0 0
        %335 = vmatpush.bf16.msra.mxu0 0
        %336 = vmatpush.bf16.msra.mxu0 %v291
        %337 = vmatmul.bf16.gmra.mxu0 %v324
        %v338 = vpop.f32.mrf.mxu0
        %v339 = vadd.f32 %v302, %v338
        %v340 = vpop.f32.mrf.mxu0
        %v341 = vadd.f32 %v307, %v340
        %342 = vmatmul.bf16.gmra.mxu0 %v327
        %v343 = vpop.f32.mrf.mxu0
        %v344 = vadd.f32 %v312, %v343
        %v345 = vpop.f32.mrf.mxu0
        %346 = vdwg.mxu0
        %347 = vst [vmem:[%s175] sm:$0xff] %v339
        %348 = vst [vmem:[%s175 + $0x8] sm:$0xff] %v341
        %349 = vst [vmem:[%s175 + $0x10] sm:$0xff] %v344
        %s350 = sand.u32 %s107, 1
        %s351 = scalar_lea.sflag [#allocation3], %s350
        %s352 = sand.u32 %s107, 1
        %s353 = smul.addr %s352, 24
        %s354 = scalar_lea.vmem [#allocation2], %s353
        // Predicated region
        $region33: #{tpu_custom_call.1} parent=31 // pred_check
          %p355 = pneg %p117
        $region34: #{tpu_custom_call.1} parent=31 // pred_check_branch
          %357 = sbr.rel (%p355) target = $region36
        $region35: #{tpu_custom_call.1} parent=31 // pred_region
          %359 = vsyncadd %s351, 0
          %s360 = smul.addr %s21, 6
          %s361 = sadd.s32 %s22, %s360
          %s362 = smul.addr %s361, 8
          %s363 = scalar_lea.hbm %s3, %s362
          %s364 = sshll.u32 %s354, 4
          %s365 = int_to_ptr.vmem [resolvable:$true] %s364
          %s366 = sshll.u32 %s363, 4
          %s367 = int_to_ptr.hbm [resolvable:$true] %s366
          %372 = dma.vmem_to_hbm [thread:$0]  %s365, 384, %s367, %s351, 128, 256, 8
        $region36: #{tpu_custom_call.1} parent=31 // pred_fallthru
          _
      $region32: #{tpu_custom_call.1} parent=5 // pred_fallthru
        _
      %p373 = scmp.le.s32.totalorder 2, %s12
      // Predicated region
      $region37: #{tpu_custom_call.1} parent=5 // pred_check
        %p374 = pneg %p373
      $region38: #{tpu_custom_call.1} parent=5 // pred_check_branch
        %376 = sbr.rel (%p374) target = $region40
      $region39: #{tpu_custom_call.1} parent=5 // pred_region
        %s377 = ssub.s32 %s12, 2
        // Predicated region
        $region41: #{tpu_custom_call.1} parent=39 // pred_check
          %p378 = pneg %p123
        $region42: #{tpu_custom_call.1} parent=39 // pred_check_branch
          %380 = sbr.rel (%p378) target = $region44
        $region43: #{tpu_custom_call.1} parent=39 // pred_region
          %s381 = sand.u32 %s108, 1
          %s382 = scalar_lea.sflag [#allocation3], %s381
          %s383 = sand.u32 %s108, 1
          %s384 = smul.addr %s383, 24
          %s385 = scalar_lea.vmem [#allocation2], %s384
          %387 = dma.done %s382, 384
        $region44: #{tpu_custom_call.1} parent=39 // pred_fallthru
          _
      $region40: #{tpu_custom_call.1} parent=5 // pred_fallthru
        _
    $region6: #{tpu_custom_call.1} parent=1 // loop_footer
      %s16 = sadd.s32 1, %s12
    $region7: #{tpu_custom_call.1} parent=1 // loop_footer_branch
      %11 = sbr.rel target = $region3
    $region8: #{tpu_custom_call.1} parent=1 // loop_exit
      _
    %388 = vsyncpa [#allocation3], 1
    %s389 = scalar_lea.sflag [#allocation3], 1
    %390 = vsyncpa %s389, 1

// kernel: tpu_custom_call.1
$region0: #{tpu_custom_call.1}
  #allocation0 [shape = 'u32[]', space=smem, size = 0x4, offset = 0x4, fixed_abs, tag = 'smem constant byte address 0x4 - core index']
  #allocation1 [shape = 'u32[72,128]{1,0:T(1,128)}', space=vmem, size = 0x9000, scoped, tag = 'internal scratch']
  %s0 = inlined_call_operand.vmem [shape: bf16[2,2,384], index: 0, kind: input, shape index: {}]
  %s1 = inlined_call_operand.vmem [shape: bf16[24,16], index: 1, kind: input, shape index: {}]
  %s2 = inlined_call_operand.vmem [shape: f32[24,1], index: 2, kind: input, shape index: {}]
  %s3 = inlined_call_operand.hbm [shape: f32[2,24,256], index: 3, kind: output, shape index: {}]
  %s4 = sld [smem:[#allocation0]]
  $region45: #{tpu_custom_call.1} parent=0
    _
  %s6 = ssub.s32 1, %s4
  %s7 = scalar_select 0, %s6, %s4
  $region1: #{tpu_custom_call.1} parent=0
    #allocation2 [shape = 'u8[24576]{0}', space=vmem, size = 0x6000, scoped, tag = 'output window, operand 0']
    #allocation3 [shape = 's32[2]{0}', space=sflag, size = 0x8, scoped, tag = 'scoped memory for tpu_custom_call.1']
    %8 = vsyncpa [#allocation3], 0
    %s9 = scalar_lea.sflag [#allocation3], 1
    %10 = vsyncpa %s9, 0
    loop: start=0, step=1, limit=6
    $region2: #{tpu_custom_call.1} parent=1 // loop_pre_header
      _
    $region3: #{tpu_custom_call.1} parent=1 // loop_header
      %s12 = sphi 0, %s16
      %p13 = scmp.ge.s32.totalorder %s12, 6
      %s19 = sphi 0, %s31
      %s20 = sphi 0, %s27
      %s21 = sphi 0, %s19
      %s22 = sphi 0, %s20
      %s23 = sphi 0, %s21
      %s24 = sphi 0, %s22
      %s34 = sphi 0, %s36
      %s37 = sphi 0, %s34
      %s38 = sphi 0, %s37
      %s54 = sphi 0, %s38
      %s58 = sphi 0, %s58
      %s60 = sphi 0, %s58
      %s61 = sphi 0, %s60
      %s75 = sphi 0, %s61
      %s79 = sphi 0, %s79
      %s81 = sphi 0, %s79
      %s82 = sphi 0, %s81
      %s96 = sphi 0, %s82
      %s104 = sphi 0, %s106
      %s107 = sphi 0, %s104
      %s108 = sphi 0, %s107
      %s124 = sphi 0, %s108
    $region4: #{tpu_custom_call.1} parent=1 // loop_header_branch
      %15 = sbr.rel (%p13) target = $region8
    $region5: #{tpu_custom_call.1} parent=1 // loop_body
      %s17 = ssub.s32 %s12, 1
      %s18 = ssub.s32 %s12, 2
      %s25 = sadd.s32 1, %s20
      %p26 = scmp.ge.s32.totalorder %s25, 2
      %s27 = scalar_select %p26, 0, %s25
      %s28 = sadd.s32 1, %s19
      %s29 = scalar_select %p26, %s28, %s19
      %p30 = scmp.ge.s32.totalorder %s29, 2
      %s31 = scalar_select %p30, 0, %s29
      %s32 = ssub.s32 %s19, %s31
      %p33 = scmp.eq.s32.totalorder %s32, 0
      %s35 = sadd.s32 %s34, 1
      %s36 = scalar_select %p33, %s34, %s35
      %p39 = pneg %p33
      %p40 = scmp.eq.s32.totalorder %s12, 3
      %p41 = por %p39, %p40
      %p42 = scmp.ne.s32.totalorder %s34, %s37
      %p43 = scmp.eq.s32.totalorder %s12, 0
      %p44 = por %p42, %p43
      %p45 = scmp.ne.s32.totalorder %s34, %s37
      %p46 = scmp.eq.s32.totalorder %s17, 3
      %p47 = por %p45, %p46
      %p48 = scmp.ne.s32.totalorder %s37, %s38
      %p49 = scmp.eq.s32.totalorder %s17, 0
      %p50 = por %p48, %p49
      %p51 = scmp.ne.s32.totalorder %s37, %s38
      %p52 = scmp.eq.s32.totalorder %s18, 3
      %p53 = por %p51, %p52
      %p55 = scmp.ne.s32.totalorder %s38, %s54
      %p56 = scmp.eq.s32.totalorder %s18, 0
      %p57 = por %p55, %p56
      %s59 = sadd.s32 %s58, 1
      %p62 = scmp.eq.s32.totalorder %s12, 3
      %p63 = scmp.ne.s32.totalorder %s58, %s60
      %p64 = scmp.eq.s32.totalorder %s12, 0
      %p65 = por %p63, %p64
      %p66 = scmp.ne.s32.totalorder %s58, %s60
      %p67 = scmp.eq.s32.totalorder %s17, 3
      %p68 = por %p66, %p67
      %p69 = scmp.ne.s32.totalorder %s60, %s61
      %p70 = scmp.eq.s32.totalorder %s17, 0
      %p71 = por %p69, %p70
      %p72 = scmp.ne.s32.totalorder %s60, %s61
      %p73 = scmp.eq.s32.totalorder %s18, 3
      %p74 = por %p72, %p73
      %p76 = scmp.ne.s32.totalorder %s61, %s75
      %p77 = scmp.eq.s32.totalorder %s18, 0
      %p78 = por %p76, %p77
      %s80 = sadd.s32 %s79, 1
      %p83 = scmp.eq.s32.totalorder %s12, 3
      %p84 = scmp.ne.s32.totalorder %s79, %s81
      %p85 = scmp.eq.s32.totalorder %s12, 0
      %p86 = por %p84, %p85
      %p87 = scmp.ne.s32.totalorder %s79, %s81
      %p88 = scmp.eq.s32.totalorder %s17, 3
      %p89 = por %p87, %p88
      %p90 = scmp.ne.s32.totalorder %s81, %s82
      %p91 = scmp.eq.s32.totalorder %s17, 0
      %p92 = por %p90, %p91
      %p93 = scmp.ne.s32.totalorder %s81, %s82
      %p94 = scmp.eq.s32.totalorder %s18, 3
      %p95 = por %p93, %p94
      %p97 = scmp.ne.s32.totalorder %s82, %s96
      %p98 = scmp.eq.s32.totalorder %s18, 0
      %p99 = por %p97, %p98
      %s100 = ssub.s32 %s19, %s31
      %s101 = ssub.s32 %s20, %s27
      %s102 = sor.u32 %s100, %s101
      %p103 = scmp.eq.s32.totalorder %s102, 0
      %s105 = sadd.s32 %s104, 1
      %s106 = scalar_select %p103, %s104, %s105
      %p109 = pneg %p103
      %p110 = scmp.eq.s32.totalorder %s12, 3
      %p111 = por %p109, %p110
      %p112 = scmp.ne.s32.totalorder %s104, %s107
      %p113 = scmp.eq.s32.totalorder %s12, 0
      %p114 = por %p112, %p113
      %p115 = scmp.ne.s32.totalorder %s104, %s107
      %p116 = scmp.eq.s32.totalorder %s17, 3
      %p117 = por %p115, %p116
      %p118 = scmp.ne.s32.totalorder %s107, %s108
      %p119 = scmp.eq.s32.totalorder %s17, 0
      %p120 = por %p118, %p119
      %p121 = scmp.ne.s32.totalorder %s107, %s108
      %p122 = scmp.eq.s32.totalorder %s18, 3
      %p123 = por %p121, %p122
      %p125 = scmp.ne.s32.totalorder %s108, %s124
      %p126 = scmp.eq.s32.totalorder %s18, 0
      %p127 = por %p125, %p126
      %p128 = scmp.le.s32.totalorder 1, %s12
      %p129 = scmp.lt.s32.totalorder %s12, 5
      %p130 = pnand %p128, %p129
      %p131 = pneg %p130
      // Predicated region
      $region9: #{tpu_custom_call.1} parent=5 // pred_check
        _
      $region10: #{tpu_custom_call.1} parent=5 // pred_check_branch
        %133 = sbr.rel (%p130) target = $region12
      $region11: #{tpu_custom_call.1} parent=5 // pred_region
        %s134 = ssub.s32 %s12, 1
        // Predicated region
        $region13: #{tpu_custom_call.1} parent=11 // pred_check
          %p135 = pneg %p71
        $region14: #{tpu_custom_call.1} parent=11 // pred_check_branch
          %137 = sbr.rel (%p135) target = $region16
        $region15: #{tpu_custom_call.1} parent=11 // pred_region
          _
        $region16: #{tpu_custom_call.1} parent=11 // pred_fallthru
          _
        // Predicated region
        $region17: #{tpu_custom_call.1} parent=11 // pred_check
          %p138 = pneg %p92
        $region18: #{tpu_custom_call.1} parent=11 // pred_check_branch
          %140 = sbr.rel (%p138) target = $region20
        $region19: #{tpu_custom_call.1} parent=11 // pred_region
          _
        $region20: #{tpu_custom_call.1} parent=11 // pred_fallthru
          _
      $region12: #{tpu_custom_call.1} parent=5 // pred_fallthru
        _
      %p141 = scmp.lt.s32.totalorder %s12, 4
      // Predicated region
      $region21: #{tpu_custom_call.1} parent=5 // pred_check
        %p142 = pneg %p141
      $region22: #{tpu_custom_call.1} parent=5 // pred_check_branch
        %144 = sbr.rel (%p142) target = $region24
      $region23: #{tpu_custom_call.1} parent=5 // pred_region
        // Predicated region
        $region25: #{tpu_custom_call.1} parent=23 // pred_check
          %p145 = pneg %p44
        $region26: #{tpu_custom_call.1} parent=23 // pred_check_branch
          %147 = sbr.rel (%p145) target = $region28
        $region27: #{tpu_custom_call.1} parent=23 // pred_region
          %p148 = scmp.lt.s32.totalorder %s19, 1
          %s149 = scalar_select %p148, %s19, 1
          %s150 = smul.addr %s149, 3
          %s151 = scalar_lea.vmem %s0, %s150
        $region28: #{tpu_custom_call.1} parent=23 // pred_fallthru
          _
      $region24: #{tpu_custom_call.1} parent=5 // pred_fallthru
        _
      %p152 = scmp.le.s32.totalorder 1, %s12
      %p153 = scmp.lt.s32.totalorder %s12, 5
      %p154 = pnand %p152, %p153
      %p155 = pneg %p154
      // Predicated region
      $region29: #{tpu_custom_call.1} parent=5 // pred_check
        _
      $region30: #{tpu_custom_call.1} parent=5 // pred_check_branch
        %157 = sbr.rel (%p154) target = $region32
      $region31: #{tpu_custom_call.1} parent=5 // pred_region
        %s158 = ssub.s32 %s12, 1
        %p159 = scmp.lt.s32.totalorder %s21, 1
        %s160 = scalar_select %p159, %s21, 1
        %s161 = smul.addr %s160, 3
        %s162 = scalar_lea.vmem %s0, %s161
        %p163 = pneg %p50
        %p164 = pneg %p47
        %p165 = pneg %p71
        %p166 = pneg %p68
        %p167 = pneg %p92
        %p168 = pneg %p89
        %p169 = pneg %p120
        %p170 = pneg %p117
        %s171 = sand.u32 %s107, 1
        %s172 = scalar_lea.sflag [#allocation3], %s171
        %s173 = sand.u32 %s107, 1
        %s174 = smul.addr %s173, 24
        %s175 = scalar_lea.vmem [#allocation2], %s174
        %p176 = scmp.lt.s32.totalorder %s21, 1
        %s177 = scalar_select %p176, %s21, 1
        %s178 = smul.addr %s177, 3
        %s179 = scalar_lea.vmem %s0, %s178
        %s181 = smul.u32 %s22, 128
        %s182 = sshra.s32 %s181, 7
        %s183 = sand.u32 %s181, 127
        %s184 = scalar_lea.vmem %s179, %s182
        %v185 = vld [vmem:[%s184] sm:$0x3]
        %s187 = scalar_lea.vmem [#allocation1], 1
        %188 = vst [vmem:[%s187] ss:$9 sm:$0xff] %v185
        %v189 = vld [vmem:[#allocation1] sm:$0xff]
        %v191 = vld [vmem:[#allocation1 + $0x9] sm:$0xff]
        %193 = vrot.lane.b32.xlu0 %v189, 127
        %v194 = vpop.permute.xlu0 %193
        %195 = vrot.lane.b32.xlu0 %v191, 127
        %v196 = vpop.permute.xlu0 %195
        %vm197 = vcmask 1039360
        %v198 = vsel %vm197, %v194, %v196
        %s199 = scalar_lea.vmem [#allocation1], 2
        %200 = vst [vmem:[%s199] ss:$9 sm:$0xff] %v185
        %v201 = vld [vmem:[#allocation1] sm:$0xff]
        %v203 = vld [vmem:[#allocation1 + $0x9] sm:$0xff]
        %205 = vrot.lane.b32.xlu0 %v201, 126
        %v206 = vpop.permute.xlu0 %205
        %207 = vrot.lane.b32.xlu0 %v203, 126
        %v208 = vpop.permute.xlu0 %207
        %vm209 = vcmask 1031168
        %v210 = vsel %vm209, %v206, %v208
        %s211 = scalar_lea.vmem [#allocation1], 3
        %212 = vst [vmem:[%s211] ss:$9 sm:$0xff] %v185
        %v213 = vld [vmem:[#allocation1] sm:$0xff]
        %v215 = vld [vmem:[#allocation1 + $0x9] sm:$0xff]
        %217 = vrot.lane.b32.xlu0 %v213, 125
        %v218 = vpop.permute.xlu0 %217
        %219 = vrot.lane.b32.xlu0 %v215, 125
        %v220 = vpop.permute.xlu0 %219
        %vm221 = vcmask 1022976
        %v222 = vsel %vm221, %v218, %v220
        %s223 = scalar_lea.vmem [#allocation1], 4
        %224 = vst [vmem:[%s223] ss:$9 sm:$0xff] %v185
        %v225 = vld [vmem:[#allocation1] sm:$0xff]
        %v227 = vld [vmem:[#allocation1 + $0x9] sm:$0xff]
        %229 = vrot.lane.b32.xlu0 %v225, 124
        %v230 = vpop.permute.xlu0 %229
        %231 = vrot.lane.b32.xlu0 %v227, 124
        %v232 = vpop.permute.xlu0 %231
        %vm233 = vcmask 1014784
        %v234 = vsel %vm233, %v230, %v232
        %s235 = scalar_lea.vmem [#allocation1], 5
        %236 = vst [vmem:[%s235] ss:$9 sm:$0xff] %v185
        %v237 = vld [vmem:[#allocation1] sm:$0xff]
        %v239 = vld [vmem:[#allocation1 + $0x9] sm:$0xff]
        %241 = vrot.lane.b32.xlu0 %v237, 123
        %v242 = vpop.permute.xlu0 %241
        %243 = vrot.lane.b32.xlu0 %v239, 123
        %v244 = vpop.permute.xlu0 %243
        %vm245 = vcmask 1006592
        %v246 = vsel %vm245, %v242, %v244
        %s247 = scalar_lea.vmem [#allocation1], 6
        %248 = vst [vmem:[%s247] ss:$9 sm:$0xff] %v185
        %v249 = vld [vmem:[#allocation1] sm:$0xff]
        %v251 = vld [vmem:[#allocation1 + $0x9] sm:$0xff]
        %253 = vrot.lane.b32.xlu0 %v249, 122
        %v254 = vpop.permute.xlu0 %253
        %255 = vrot.lane.b32.xlu0 %v251, 122
        %v256 = vpop.permute.xlu0 %255
        %vm257 = vcmask 998400
        %v258 = vsel %vm257, %v254, %v256
        %s259 = scalar_lea.vmem [#allocation1], 7
        %260 = vst [vmem:[%s259] ss:$9 sm:$0xff] %v185
        %v261 = vld [vmem:[#allocation1] sm:$0xff]
        %v263 = vld [vmem:[#allocation1 + $0x9] sm:$0xff]
        %265 = vrot.lane.b32.xlu0 %v261, 121
        %v266 = vpop.permute.xlu0 %265
        %267 = vrot.lane.b32.xlu0 %v263, 121
        %v268 = vpop.permute.xlu0 %267
        %vm269 = vcmask 990208
        %v270 = vsel %vm269, %v266, %v268
        %vm271 = vcmask 1040384
        %v273 = vsel %vm271, %v185, %v198
        %vm274 = vcmask 1041408
        %v276 = vsel %vm274, %v273, %v210
        %vm277 = vcmask 1042432
        %v279 = vsel %vm277, %v276, %v222
        %vm280 = vcmask 1043456
        %v282 = vsel %vm280, %v279, %v234
        %vm283 = vcmask 1044480
        %v285 = vsel %vm283, %v282, %v246
        %vm286 = vcmask 1045504
        %v288 = vsel %vm286, %v285, %v258
        %vm289 = vcmask 1046528
        %v291 = vsel %vm289, %v288, %v270
        %v293 = vld [vmem:[%s1] sm:$0xf]
        %v294 = vld [vmem:[%s1 + $0x4] sm:$0xf]
        %v295 = vld [vmem:[%s1 + $0x8] sm:$0xf]
        %v296 = vld [vmem:[%s2] sm:$0xff]
        %v297 = vld [vmem:[%s2 + $0x8] sm:$0xff]
        %v298 = vld [vmem:[%s2 + $0x10] sm:$0xff]
        %300 = vset.pattern.permute.xlu0 0
        %301 = vperm.xlu0 %300, %v296
        %v302 = vpop.permute.xlu0 %301
        %305 = vset.pattern.permute.xlu0 0
        %306 = vperm.xlu0 %305, %v297
        %v307 = vpop.permute.xlu0 %306
        %310 = vset.pattern.permute.xlu0 0
        %311 = vperm.xlu0 %310, %v298
        %v312 = vpop.permute.xlu0 %311
        %v317 = vunpack.c.l.b16 %v293
        %v318 = vunpack.c.l.b16 %v294
        %v319 = vunpack.c.l.b16 %v295
        %v320 = vpack.c.b16 %v318, %v317
        %v321 = vpack.c.b16 %v319, %v319
        %vm322 = vcmask 130048
        %v324 = vsel %vm322, %v320, 0
        %v327 = vsel %vm322, %v321, 0
        %329 = vmatpush.bf16.msra.mxu0 0
        %330 = vmatpush.bf16.msra.mxu0 0
        %331 = vmatpush.bf16.msra.mxu0 0
        %332 = vmatpush.bf16.msra.mxu0 0
        %333 = vmatpush.bf16.msra.mxu0 0
        %334 = vmatpush.bf16.msra.mxu0 0
        %335 = vmatpush.bf16.msra.mxu0 0
        %336 = vmatpush.bf16.msra.mxu0 %v291
        %337 = vmatmul.bf16.gmra.mxu0 %v324
        %v338 = vpop.f32.mrf.mxu0
        %v339 = vadd.f32 %v302, %v338
        %v340 = vpop.f32.mrf.mxu0
        %v341 = vadd.f32 %v307, %v340
        %342 = vmatmul.bf16.gmra.mxu0 %v327
        %v343 = vpop.f32.mrf.mxu0
        %v344 = vadd.f32 %v312, %v343
        %v345 = vpop.f32.mrf.mxu0
        %346 = vdwg.mxu0
        %347 = vst [vmem:[%s175] sm:$0xff] %v339
        %348 = vst [vmem:[%s175 + $0x8] sm:$0xff] %v341
        %349 = vst [vmem:[%s175 + $0x10] sm:$0xff] %v344
        %s350 = sand.u32 %s107, 1
        %s351 = scalar_lea.sflag [#allocation3], %s350
        %s352 = sand.u32 %s107, 1
        %s353 = smul.addr %s352, 24
        %s354 = scalar_lea.vmem [#allocation2], %s353
        // Predicated region
        $region33: #{tpu_custom_call.1} parent=31 // pred_check
          %p355 = pneg %p117
        $region34: #{tpu_custom_call.1} parent=31 // pred_check_branch
          %357 = sbr.rel (%p355) target = $region36
        $region35: #{tpu_custom_call.1} parent=31 // pred_region
          %359 = vsyncadd %s351, 0
          %s360 = smul.addr %s21, 6
          %s361 = sadd.s32 %s22, %s360
          %s362 = smul.addr %s361, 8
          %s363 = scalar_lea.hbm %s3, %s362
          %s364 = sshll.u32 %s354, 4
          %s365 = int_to_ptr.vmem [resolvable:$true] %s364
          %s366 = sshll.u32 %s363, 4
          %s367 = int_to_ptr.hbm [resolvable:$true] %s366
          %372 = dma.vmem_to_hbm [thread:$0]  %s365, 384, %s367, %s351, 128, 256, 8
        $region36: #{tpu_custom_call.1} parent=31 // pred_fallthru
          _
      $region32: #{tpu_custom_call.1} parent=5 // pred_fallthru
        _
      %p373 = scmp.le.s32.totalorder 2, %s12
      // Predicated region
      $region37: #{tpu_custom_call.1} parent=5 // pred_check
        %p374 = pneg %p373
      $region38: #{tpu_custom_call.1} parent=5 // pred_check_branch
        %376 = sbr.rel (%p374) target = $region40
      $region39: #{tpu_custom_call.1} parent=5 // pred_region
        %s377 = ssub.s32 %s12, 2
        // Predicated region
        $region41: #{tpu_custom_call.1} parent=39 // pred_check
          %p378 = pneg %p123
        $region42: #{tpu_custom_call.1} parent=39 // pred_check_branch
          %380 = sbr.rel (%p378) target = $region44
        $region43: #{tpu_custom_call.1} parent=39 // pred_region
          %s381 = sand.u32 %s108, 1
          %s382 = scalar_lea.sflag [#allocation3], %s381
          %s383 = sand.u32 %s108, 1
          %s384 = smul.addr %s383, 24
          %s385 = scalar_lea.vmem [#allocation2], %s384
          %387 = dma.done %s382, 384
        $region44: #{tpu_custom_call.1} parent=39 // pred_fallthru
          _
      $region40: #{tpu_custom_call.1} parent=5 // pred_fallthru
        _
    $region6: #{tpu_custom_call.1} parent=1 // loop_footer
      %s16 = sadd.s32 1, %s12
    $region7: #{tpu_custom_call.1} parent=1 // loop_footer_branch
      %11 = sbr.rel target = $region3
    $region8: #{tpu_custom_call.1} parent=1 // loop_exit
      _
    %388 = vsyncpa [#allocation3], 1
    %s389 = scalar_lea.sflag [#allocation3], 1
    %390 = vsyncpa %s389, 1

</llo_original>
